<compile_context>
chip_gen: v5e
topology: v5e:2x2
jax: 0.10.0
libtpu: 0.0.40
codegen_flags: <defaults>
</compile_context>

<pallas_src>
import functools

import numpy as np
import jax
import jax.numpy as jnp
from jax.experimental import pallas as pl
from jax.experimental.pallas import tpu as pltpu


NEG_INF = -1e30  # softmax mask value for padded lanes


def _round_up(x, m):
    return ((x + m - 1) // m) * m


# ----------------------------- kernel -------------------------------------- #

def _mlp_softmax_kernel(sum_actions, num_x, *refs):
    """Fused 3-layer MLP + row softmax.

    refs = x_refs (num_x) + w1_refs (num_x) + (b1, w2, b2, wh, bh) + (out,)
    Matmul operands bf16, accumulation/bias/softmax f32.  Padded head lanes are
    masked to NEG_INF before the softmax; only the A valid lanes are written out.
    """
    x_refs = refs[:num_x]
    w1_refs = refs[num_x:2 * num_x]
    b1_ref, w2_ref, b2_ref, wh_ref, bh_ref, out_ref = refs[2 * num_x:]
    cd = w1_refs[0].dtype  # MXU compute dtype (bf16)

    # fc1 (+ fused concat when num_x == 2) + ReLU, f32 accumulate.
    h1 = b1_ref[...]
    for x_ref, w_ref in zip(x_refs, w1_refs):
        h1 = h1 + jnp.dot(x_ref[...].astype(cd), w_ref[...],
                          preferred_element_type=jnp.float32)
    h1 = jnp.maximum(h1, 0.0)

    # fc2 / action_fc + ReLU.
    h2 = jnp.dot(h1.astype(cd), w2_ref[...],
                 preferred_element_type=jnp.float32) + b2_ref[...]
    h2 = jnp.maximum(h2, 0.0)

    # action_value head (dueling state-value branch cancels under the softmax).
    head = jnp.dot(h2.astype(cd), wh_ref[...],
                   preferred_element_type=jnp.float32) + bh_ref[...]

    lane = jax.lax.broadcasted_iota(jnp.int32, head.shape, 1)
    logits = jnp.where(lane < sum_actions, head, NEG_INF)

    m = jnp.max(logits, axis=1, keepdims=True)
    e = jnp.exp(logits - m)
    denom = jnp.sum(e, axis=1, keepdims=True)
    probs = e * pl.reciprocal(denom, approx=False)   # exact: rows sum to 1 (f32)

    out_ref[...] = probs[:, :sum_actions]            # only valid lanes hit HBM


# ------------------------- parameter preparation --------------------------- #

def _pad2(a, rows, cols):
    r, c = a.shape
    return jnp.pad(a, ((0, rows - r), (0, cols - c)))


def prepare_kernel_params(params, obs_dim, hidden_dim, num_actions, use_dueling,
                          compute_dtype=jnp.bfloat16):
    """One-time: select live branch, zero-pad lanes to 128, cast matmul weights to bf16."""
    A = int(np.sum(num_actions))
    H = hidden_dim
    HP = _round_up(H, 128)     # padded hidden lanes
    OP = _round_up(A, 128)     # padded head lanes

    w1 = params['w1']          # (obs_dim + A, H)
    prep = {
        'sum_actions': A,
        'obs_dim': obs_dim,
        'compute_dtype': compute_dtype,
        # unsplit fc1 weight: actq='uniform' (single input stream, one fc1 dot)
        'w1_full': _pad2(w1, w1.shape[0], HP).astype(compute_dtype),
        # split fc1 weight: actq='concat' (obs|B concat fused as two dots)
        'w1_obs': _pad2(w1[:obs_dim], obs_dim, HP).astype(compute_dtype),
        'w1_B': _pad2(w1[obs_dim:], w1.shape[0] - obs_dim, HP).astype(compute_dtype),
        'b1': _pad2(params['b1'], 1, HP).astype(jnp.float32),
    }

    if use_dueling:
        # softmax(state_value + action_value - mean(action_value)) == softmax(action_value):
        # the state-value branch and the mean-centering are per-row constants that cancel
        # under the row softmax, so only action_fc / action_value survive into the kernel.
        w2, b2 = params['w_af'], params['b_af']
    else:
        w2, b2 = params['w2'], params['b2']

    prep.update(
        w2=_pad2(w2, HP, HP).astype(compute_dtype),
        b2=_pad2(b2, 1, HP).astype(jnp.float32),
        wh=_pad2(params['w_av'], HP, OP).astype(compute_dtype),
        bh=_pad2(params['b_av'], 1, OP).astype(jnp.float32),
    )
    return prep


# ----------------------------- wrapper -------------------------------------- #

def _choose_tb(batch):
    if batch <= 128:
        return batch                       # single full-array block
    # >= 2 grid steps so ("parallel",) can shard across both v7x TensorCores;
    # cap 2048 amortizes the ~0.35us/step overhead while the f32 intermediates
    # (~TB * 384 * 4 B) stay far below v5e's 16 MiB scoped-VMEM default.
    tb = _round_up(pl.cdiv(batch, 2), 8)
    return min(tb, 2048)


def net_forward(prep, obs, B, num_actions, actq):
    """Mirrors net.forward(obs, B) using prepared (padded/bf16) weights."""
    if obs.ndim == 1:
        obs = obs[None, :]
    cd = prep['compute_dtype']
    A = prep['sum_actions']

    if actq == 'uniform':
        # fc1 input is obs itself: single stream, unsplit weight (no wrapper-side split copies).
        x_parts = (obs.astype(cd),)
        w1_parts = (prep['w1_full'],)
    else:
        # torch.cat((obs, B), 1) fused into the kernel via the split fc1 weight.
        x_parts = (obs.astype(cd), B.astype(cd))
        w1_parts = (prep['w1_obs'], prep['w1_B'])

    batch = x_parts[0].shape[0]
    num_x = len(x_parts)
    w_args = w1_parts + (prep['b1'], prep['w2'], prep['b2'], prep['wh'], prep['bh'])

    TB = _choose_tb(batch)
    grid = (pl.cdiv(batch, TB),)

    in_specs = ([pl.BlockSpec((TB, x.shape[1]), lambda i: (i, 0)) for x in x_parts]
                + [pl.BlockSpec(w.shape, lambda i: (0, 0)) for w in w_args])
    out_specs = pl.BlockSpec((TB, A), lambda i: (i, 0))   # only valid lanes in HBM

    out = pl.pallas_call(
        functools.partial(_mlp_softmax_kernel, A, num_x),
        out_shape=jax.ShapeDtypeStruct((batch, A), jnp.float32),
        grid=grid,
        in_specs=in_specs,
        out_specs=out_specs,
        compiler_params=pltpu.CompilerParams(dimension_semantics=("parallel",)),
    )(*x_parts, *w_args)

    # reshape(action, (-1, num_actions.size, num_actions[0])) -- metadata only.
    return out.reshape(-1, int(num_actions.size), int(num_actions[0]))


# ------------------------- parameter initialization ------------------------ #

def _linear_params(key, fan_in, fan_out):
    # PyTorch nn.Linear default init: U(-1/sqrt(fan_in), 1/sqrt(fan_in))
    kw, kb = jax.random.split(key)
    bound = 1.0 / np.sqrt(fan_in)
    w = jax.random.uniform(kw, (fan_in, fan_out), jnp.float32, -bound, bound)
    b = jax.random.uniform(kb, (1, fan_out), jnp.float32, -bound, bound)
    return w, b


def make_params(key, obs_dim, hidden_dim, num_actions, use_dueling):
    sum_actions = int(np.sum(num_actions))
    in_dim = obs_dim + sum_actions
    keys = jax.random.split(key, 6)
    params = {}
    params['w1'], params['b1'] = _linear_params(keys[0], in_dim, hidden_dim)
    if not use_dueling:
        params['w2'], params['b2'] = _linear_params(keys[1], hidden_dim, hidden_dim)
        params['w_av'], params['b_av'] = _linear_params(keys[2], hidden_dim, sum_actions)
    else:
        params['w_af'], params['b_af'] = _linear_params(keys[1], hidden_dim, hidden_dim)
        params['w_svf'], params['b_svf'] = _linear_params(keys[2], hidden_dim, hidden_dim)
        params['w_av'], params['b_av'] = _linear_params(keys[3], hidden_dim, sum_actions)
        params['w_sv'], params['b_sv'] = _linear_params(keys[4], hidden_dim, 1)
    return params


# ------------------------- pure-JAX reference (f32, literal module) -------- #

def net_reference(params, obs, B, num_actions, use_dueling, actq):
    if obs.ndim == 1:
        obs = obs[None, :]
    x = obs if actq == 'uniform' else jnp.concatenate((obs, B), axis=1)
    x = jax.nn.relu(x @ params['w1'] + params['b1'])
    if not use_dueling:
        x = jax.nn.relu(x @ params['w2'] + params['b2'])
        logits = x @ params['w_av'] + params['b_av']
    else:
        af = jax.nn.relu(x @ params['w_af'] + params['b_af'])
        av = af @ params['w_av'] + params['b_av']
        svf = jax.nn.relu(x @ params['w_svf'] + params['b_svf'])
        sv = svf @ params['w_sv'] + params['b_sv']
        logits = sv + (av - jnp.mean(av, axis=1, keepdims=True))
    action = jax.nn.softmax(logits, axis=1)
    return action.reshape(-1, int(num_actions.size), int(num_actions[0]))


# --------------------------------- main ------------------------------------ #

if __name__ == "__main__":
    # small, forward-consistent shapes
    obs_dim = 16
    hidden_dim = 32
    num_actions = np.array([4, 4, 4, 4])     # num_actions.size = 4, num_actions[0] = 4
    sum_actions = int(np.sum(num_actions))   # 16
    batch = 2

    key = jax.random.PRNGKey(0)
    k_obs, k_obs_u, k_B, k_p1, k_p2 = jax.random.split(key, 5)
    obs_c = jax.random.normal(k_obs, (batch, obs_dim), jnp.float32)                 # actq='concat'
    obs_u = jax.random.normal(k_obs_u, (batch, obs_dim + sum_actions), jnp.float32)  # actq='uniform'
    Bmat = jax.random.normal(k_B, (batch, sum_actions), jnp.float32)

    ok = True
    for use_dueling, kparam in ((True, k_p1), (False, k_p2)):
        params = make_params(kparam, obs_dim, hidden_dim, num_actions, use_dueling)
        prep = prepare_kernel_params(params, obs_dim, hidden_dim, num_actions, use_dueling)
        for actq, obs in (('concat', obs_c), ('uniform', obs_u)):
            out = net_forward(prep, obs, Bmat, num_actions, actq)
            out = jax.block_until_ready(out)
            ref = net_reference(params, obs, Bmat, num_actions, use_dueling, actq)
            assert out.shape == (batch, num_actions.size, int(num_actions[0]))
            # bf16 MXU operands in the kernel vs. a pure-f32 reference (dueling combine is
            # mathematically a no-op under the row softmax): relaxed but tight tolerance.
            ok = ok and bool(jnp.allclose(out, ref, atol=2e-2, rtol=2e-2))

    if ok:
        print("KERNEL_OK")
</pallas_src>

<mosaic_0001>
module attributes {stable_mosaic.version = 11 : i64} {
  func.func @_mlp_softmax_kernel(%arg0: i32, %arg1: memref<2x16xbf16, #tpu.memory_space<vmem>>, %arg2: memref<2x16xbf16, #tpu.memory_space<vmem>>, %arg3: memref<16x128xbf16, #tpu.memory_space<vmem>>, %arg4: memref<16x128xbf16, #tpu.memory_space<vmem>>, %arg5: memref<1x128xf32, #tpu.memory_space<vmem>>, %arg6: memref<128x128xbf16, #tpu.memory_space<vmem>>, %arg7: memref<1x128xf32, #tpu.memory_space<vmem>>, %arg8: memref<128x128xbf16, #tpu.memory_space<vmem>>, %arg9: memref<1x128xf32, #tpu.memory_space<vmem>>, %arg10: memref<2x16xf32, #tpu.memory_space<vmem>>) attributes {dimension_semantics = [#tpu.dimension_semantics<parallel>], iteration_bounds = array<i64: 1>, scalar_prefetch = 0 : i64, scratch_operands = 0 : i64, tpu.core_type = #tpu.core_type<tc>, window_params = [{transform_indices = @transform_0, window_bounds = array<i64: 2, 16>}, {transform_indices = @transform_1, window_bounds = array<i64: 2, 16>}, {pipeline_mode = #tpu.pipeline_mode<synchronous>, transform_indices = @transform_2, window_bounds = array<i64: 16, 128>}, {pipeline_mode = #tpu.pipeline_mode<synchronous>, transform_indices = @transform_3, window_bounds = array<i64: 16, 128>}, {pipeline_mode = #tpu.pipeline_mode<synchronous>, transform_indices = @transform_4, window_bounds = array<i64: 1, 128>}, {pipeline_mode = #tpu.pipeline_mode<synchronous>, transform_indices = @transform_5, window_bounds = array<i64: 128, 128>}, {pipeline_mode = #tpu.pipeline_mode<synchronous>, transform_indices = @transform_6, window_bounds = array<i64: 1, 128>}, {pipeline_mode = #tpu.pipeline_mode<synchronous>, transform_indices = @transform_7, window_bounds = array<i64: 128, 128>}, {pipeline_mode = #tpu.pipeline_mode<synchronous>, transform_indices = @transform_8, window_bounds = array<i64: 1, 128>}, {transform_indices = @transform_9, window_bounds = array<i64: 2, 16>}]} {
    %c0 = arith.constant 0 : index
    %c0_0 = arith.constant 0 : index
    %0 = vector.load %arg5[%c0, %c0_0] : memref<1x128xf32, #tpu.memory_space<vmem>>, vector<1x128xf32>
    %c0_1 = arith.constant 0 : index
    %c0_2 = arith.constant 0 : index
    %1 = vector.load %arg1[%c0_1, %c0_2] : memref<2x16xbf16, #tpu.memory_space<vmem>>, vector<2x16xbf16>
    %c0_3 = arith.constant 0 : index
    %c0_4 = arith.constant 0 : index
    %2 = vector.load %arg3[%c0_3, %c0_4] : memref<16x128xbf16, #tpu.memory_space<vmem>>, vector<16x128xbf16>
    %cst = arith.constant dense<0.000000e+00> : vector<2x128xf32>
    %3 = tpu.matmul %1, %2, %cst {dimension_numbers = #tpu.dot_dimension_numbers<[1], [0], [0], [1], [0, 0, 1, 1], [], []>} : vector<2x16xbf16>, vector<16x128xbf16>, vector<2x128xf32> -> vector<2x128xf32>
    %4 = vector.broadcast %0 : vector<1x128xf32> to vector<2x128xf32>
    %5 = arith.addf %4, %3 : vector<2x128xf32>
    %c0_5 = arith.constant 0 : index
    %c0_6 = arith.constant 0 : index
    %6 = vector.load %arg2[%c0_5, %c0_6] : memref<2x16xbf16, #tpu.memory_space<vmem>>, vector<2x16xbf16>
    %c0_7 = arith.constant 0 : index
    %c0_8 = arith.constant 0 : index
    %7 = vector.load %arg4[%c0_7, %c0_8] : memref<16x128xbf16, #tpu.memory_space<vmem>>, vector<16x128xbf16>
    %cst_9 = arith.constant dense<0.000000e+00> : vector<2x128xf32>
    %8 = tpu.matmul %6, %7, %cst_9 {dimension_numbers = #tpu.dot_dimension_numbers<[1], [0], [0], [1], [0, 0, 1, 1], [], []>} : vector<2x16xbf16>, vector<16x128xbf16>, vector<2x128xf32> -> vector<2x128xf32>
    %9 = arith.addf %5, %8 : vector<2x128xf32>
    %cst_10 = arith.constant 0.000000e+00 : f32
    %10 = vector.broadcast %cst_10 : f32 to vector<2x128xf32>
    %11 = arith.maximumf %9, %10 : vector<2x128xf32>
    %12 = arith.truncf %11 : vector<2x128xf32> to vector<2x128xbf16>
    %c0_11 = arith.constant 0 : index
    %c0_12 = arith.constant 0 : index
    %13 = vector.load %arg6[%c0_11, %c0_12] : memref<128x128xbf16, #tpu.memory_space<vmem>>, vector<128x128xbf16>
    %cst_13 = arith.constant dense<0.000000e+00> : vector<2x128xf32>
    %14 = tpu.matmul %12, %13, %cst_13 {dimension_numbers = #tpu.dot_dimension_numbers<[1], [0], [0], [1], [0, 0, 1, 1], [], []>} : vector<2x128xbf16>, vector<128x128xbf16>, vector<2x128xf32> -> vector<2x128xf32>
    %c0_14 = arith.constant 0 : index
    %c0_15 = arith.constant 0 : index
    %15 = vector.load %arg7[%c0_14, %c0_15] : memref<1x128xf32, #tpu.memory_space<vmem>>, vector<1x128xf32>
    %16 = vector.broadcast %15 : vector<1x128xf32> to vector<2x128xf32>
    %17 = arith.addf %14, %16 : vector<2x128xf32>
    %cst_16 = arith.constant 0.000000e+00 : f32
    %18 = vector.broadcast %cst_16 : f32 to vector<2x128xf32>
    %19 = arith.maximumf %17, %18 : vector<2x128xf32>
    %20 = arith.truncf %19 : vector<2x128xf32> to vector<2x128xbf16>
    %c0_17 = arith.constant 0 : index
    %c0_18 = arith.constant 0 : index
    %21 = vector.load %arg8[%c0_17, %c0_18] : memref<128x128xbf16, #tpu.memory_space<vmem>>, vector<128x128xbf16>
    %cst_19 = arith.constant dense<0.000000e+00> : vector<2x128xf32>
    %22 = tpu.matmul %20, %21, %cst_19 {dimension_numbers = #tpu.dot_dimension_numbers<[1], [0], [0], [1], [0, 0, 1, 1], [], []>} : vector<2x128xbf16>, vector<128x128xbf16>, vector<2x128xf32> -> vector<2x128xf32>
    %c0_20 = arith.constant 0 : index
    %c0_21 = arith.constant 0 : index
    %23 = vector.load %arg9[%c0_20, %c0_21] : memref<1x128xf32, #tpu.memory_space<vmem>>, vector<1x128xf32>
    %24 = vector.broadcast %23 : vector<1x128xf32> to vector<2x128xf32>
    %25 = arith.addf %22, %24 : vector<2x128xf32>
    %26 = tpu.iota {dimensions = array<i32: 1>} : vector<2x128xi32>
    %c16_i32 = arith.constant 16 : i32
    %27 = vector.broadcast %c16_i32 : i32 to vector<2x128xi32>
    %28 = arith.cmpi slt, %26, %27 : vector<2x128xi32>
    %cst_22 = arith.constant -1.000000e+30 : f32
    %29 = vector.broadcast %cst_22 : f32 to vector<2x128xf32>
    %30 = arith.select %28, %25, %29 : vector<2x128xi1>, vector<2x128xf32>
    %cst_23 = arith.constant dense<0xFF800000> : vector<2xf32>
    %31 = vector.multi_reduction <maximumf>, %30, %cst_23 [1] : vector<2x128xf32> to vector<2xf32>
    %32 = vector.shape_cast %31 : vector<2xf32> to vector<2x1xf32>
    %33 = vector.broadcast %32 : vector<2x1xf32> to vector<2x128xf32>
    %34 = arith.subf %30, %33 : vector<2x128xf32>
    %35 = math.exp %34 : vector<2x128xf32>
    %cst_24 = arith.constant dense<0.000000e+00> : vector<2xf32>
    %36 = vector.multi_reduction <add>, %35, %cst_24 [1] : vector<2x128xf32> to vector<2xf32>
    %37 = vector.shape_cast %36 : vector<2xf32> to vector<2x1xf32>
    %38 = tpu.reciprocal %37 : vector<2x1xf32> -> vector<2x1xf32>
    %39 = vector.broadcast %38 : vector<2x1xf32> to vector<2x128xf32>
    %40 = arith.mulf %35, %39 : vector<2x128xf32>
    %41 = vector.extract_strided_slice %40 {offsets = [0, 0], sizes = [2, 16], strides = [1, 1]} : vector<2x128xf32> to vector<2x16xf32>
    %c0_25 = arith.constant 0 : index
    %c0_26 = arith.constant 0 : index
    %42 = vector.load %arg10[%c0_25, %c0_26] : memref<2x16xf32, #tpu.memory_space<vmem>>, vector<2x16xf32>
    tpu.vector_store %arg10[%c0_25, %c0_26], %41 {strides = array<i32>} : memref<2x16xf32, #tpu.memory_space<vmem>>, vector<2x16xf32>,
    return
  }
  func.func @transform_0(%arg0: i32) -> (i32, i32) {
    %c0_i32 = arith.constant 0 : i32
    %c0_i32_0 = arith.constant 0 : i32
    return %arg0, %c0_i32 : i32, i32
  }
  func.func @transform_1(%arg0: i32) -> (i32, i32) {
    %c0_i32 = arith.constant 0 : i32
    %c0_i32_0 = arith.constant 0 : i32
    return %arg0, %c0_i32 : i32, i32
  }
  func.func @transform_2(%arg0: i32) -> (i32, i32) {
    %c0_i32 = arith.constant 0 : i32
    %c0_i32_0 = arith.constant 0 : i32
    %c0_i32_1 = arith.constant 0 : i32
    return %c0_i32, %c0_i32_0 : i32, i32
  }
  func.func @transform_3(%arg0: i32) -> (i32, i32) {
    %c0_i32 = arith.constant 0 : i32
    %c0_i32_0 = arith.constant 0 : i32
    %c0_i32_1 = arith.constant 0 : i32
    return %c0_i32, %c0_i32_0 : i32, i32
  }
  func.func @transform_4(%arg0: i32) -> (i32, i32) {
    %c0_i32 = arith.constant 0 : i32
    %c0_i32_0 = arith.constant 0 : i32
    %c0_i32_1 = arith.constant 0 : i32
    return %c0_i32, %c0_i32_0 : i32, i32
  }
  func.func @transform_5(%arg0: i32) -> (i32, i32) {
    %c0_i32 = arith.constant 0 : i32
    %c0_i32_0 = arith.constant 0 : i32
    %c0_i32_1 = arith.constant 0 : i32
    return %c0_i32, %c0_i32_0 : i32, i32
  }
  func.func @transform_6(%arg0: i32) -> (i32, i32) {
    %c0_i32 = arith.constant 0 : i32
    %c0_i32_0 = arith.constant 0 : i32
    %c0_i32_1 = arith.constant 0 : i32
    return %c0_i32, %c0_i32_0 : i32, i32
  }
  func.func @transform_7(%arg0: i32) -> (i32, i32) {
    %c0_i32 = arith.constant 0 : i32
    %c0_i32_0 = arith.constant 0 : i32
    %c0_i32_1 = arith.constant 0 : i32
    return %c0_i32, %c0_i32_0 : i32, i32
  }
  func.func @transform_8(%arg0: i32) -> (i32, i32) {
    %c0_i32 = arith.constant 0 : i32
    %c0_i32_0 = arith.constant 0 : i32
    %c0_i32_1 = arith.constant 0 : i32
    return %c0_i32, %c0_i32_0 : i32, i32
  }
  func.func @transform_9(%arg0: i32) -> (i32, i32) {
    %c0_i32 = arith.constant 0 : i32
    %c0_i32_0 = arith.constant 0 : i32
    return %arg0, %c0_i32 : i32, i32
  }
}

</mosaic_0001>

<llo_original>
// kernel: tpu_custom_call.1
$region0: #{tpu_custom_call.1}
  #allocation0 [shape = 'u32[]', space=smem, size = 0x4, offset = 0x4, fixed_abs, tag = 'smem constant byte address 0x4 - core index']
  #allocation1 [shape = 'u32[72,128]{1,0:T(1,128)}', space=vmem, size = 0x9000, scoped, tag = 'internal scratch']
  %s0 = inlined_call_operand.hbm [shape: bf16[2,16], index: 0, kind: input, shape index: {}]
  %s1 = inlined_call_operand.hbm [shape: bf16[2,16], index: 1, kind: input, shape index: {}]
  %s2 = inlined_call_operand.hbm [shape: bf16[16,128], index: 2, kind: input, shape index: {}]
  %s3 = inlined_call_operand.hbm [shape: bf16[16,128], index: 3, kind: input, shape index: {}]
  %s4 = inlined_call_operand.vmem [shape: f32[1,128], index: 4, kind: input, shape index: {}]
  %s5 = inlined_call_operand.hbm [shape: bf16[128,128], index: 5, kind: input, shape index: {}]
  %s6 = inlined_call_operand.vmem [shape: f32[1,128], index: 6, kind: input, shape index: {}]
  %s7 = inlined_call_operand.hbm [shape: bf16[128,128], index: 7, kind: input, shape index: {}]
  %s8 = inlined_call_operand.vmem [shape: f32[1,128], index: 8, kind: input, shape index: {}]
  %s9 = inlined_call_operand.hbm [shape: f32[2,16], index: 9, kind: output, shape index: {}]
  %s10 = sld [smem:[#allocation0]]
  $region70: #{tpu_custom_call.1} parent=0
    _
  %s12 = ssub.s32 1, %s10
  %s13 = scalar_select 0, %s12, %s10
  $region1: #{tpu_custom_call.1} parent=0
    #allocation2 [shape = 'u8[512]{0}', space=vmem, size = 0x400, scoped, tag = 'input window, operand 0, single buffered']
    #allocation3 [shape = 's32[1]{0}', space=sflag, size = 0x4, scoped, tag = 'scoped memory for tpu_custom_call.1']
    #allocation4 [shape = 's32[1]{0}', space=sflag, size = 0x4, scoped, tag = 'scoped memory for tpu_custom_call.1']
    #allocation5 [shape = 'u8[512]{0}', space=vmem, size = 0x400, scoped, tag = 'input window, operand 1, single buffered']
    #allocation6 [shape = 's32[1]{0}', space=sflag, size = 0x4, scoped, tag = 'scoped memory for tpu_custom_call.1']
    #allocation7 [shape = 'u8[4096]{0}', space=vmem, size = 0x1000, scoped, tag = 'input window, operand 2, single buffered']
    #allocation8 [shape = 'u8[4096]{0}', space=vmem, size = 0x1000, scoped, tag = 'input window, operand 3, single buffered']
    #allocation9 [shape = 's32[1]{0}', space=sflag, size = 0x4, scoped, tag = 'scoped memory for tpu_custom_call.1']
    #allocation10 [shape = 'u8[32768]{0}', space=vmem, size = 0x8000, scoped, tag = 'input window, operand 5, single buffered']
    #allocation11 [shape = 'u8[32768]{0}', space=vmem, size = 0x8000, scoped, tag = 'input window, operand 7, single buffered']
    #allocation12 [shape = 's32[1]{0}', space=sflag, size = 0x4, scoped, tag = 'scoped memory for tpu_custom_call.1']
    #allocation13 [shape = 'u8[1024]{0}', space=vmem, size = 0x400, scoped, tag = 'output window, operand 0, single buffered']
    %14 = vsyncpa [#allocation3], 0
    %15 = vsyncpa [#allocation6], 0
    %16 = vsyncpa [#allocation9], 0
    %17 = vsyncpa [#allocation12], 0
    %18 = vsyncpa [#allocation4], 0
    // Predicated region
    $region2: #{tpu_custom_call.1} parent=1 // pred_check
      _
    $region3: #{tpu_custom_call.1} parent=1 // pred_check_branch
      %20 = sbr.rel (0) target = $region5
    $region4: #{tpu_custom_call.1} parent=1 // pred_region
      %22 = vsyncadd [#allocation3], 0
      %s24 = sshll.u32 %s0, 4
      %s25 = int_to_ptr.hbm [resolvable:$true] %s24
      %s26 = sshll.u32 [#allocation2], 4
      %s27 = int_to_ptr.vmem [resolvable:$true] %s26
      %29 = dma.hbm_to_vmem [thread:$0]  %s25, 16, %s27, [#allocation3]
    $region5: #{tpu_custom_call.1} parent=1 // pred_fallthru
      _
    // Predicated region
    $region6: #{tpu_custom_call.1} parent=1 // pred_check
      _
    $region7: #{tpu_custom_call.1} parent=1 // pred_check_branch
      %31 = sbr.rel (0) target = $region9
    $region8: #{tpu_custom_call.1} parent=1 // pred_region
      %33 = vsyncadd [#allocation6], 0
      %s35 = sshll.u32 %s1, 4
      %s36 = int_to_ptr.hbm [resolvable:$true] %s35
      %s37 = sshll.u32 [#allocation5], 4
      %s38 = int_to_ptr.vmem [resolvable:$true] %s37
      %40 = dma.hbm_to_vmem [thread:$0]  %s36, 16, %s38, [#allocation6]
    $region9: #{tpu_custom_call.1} parent=1 // pred_fallthru
      _
    // Predicated region
    $region10: #{tpu_custom_call.1} parent=1 // pred_check
      _
    $region11: #{tpu_custom_call.1} parent=1 // pred_check_branch
      %42 = sbr.rel (0) target = $region13
    $region12: #{tpu_custom_call.1} parent=1 // pred_region
      %44 = vsyncadd [#allocation6], 0
      %s45 = sshll.u32 %s2, 4
      %s46 = int_to_ptr.hbm [resolvable:$true] %s45
      %s47 = sshll.u32 [#allocation7], 4
      %s48 = int_to_ptr.vmem [resolvable:$true] %s47
      %53 = dma.hbm_to_vmem [thread:$0]  %s46, 128, %s48, [#allocation6], 64, 64, 4
    $region13: #{tpu_custom_call.1} parent=1 // pred_fallthru
      _
    // Predicated region
    $region14: #{tpu_custom_call.1} parent=1 // pred_check
      _
    $region15: #{tpu_custom_call.1} parent=1 // pred_check_branch
      %55 = sbr.rel (0) target = $region17
    $region16: #{tpu_custom_call.1} parent=1 // pred_region
      %57 = vsyncadd [#allocation9], 0
      %s58 = sshll.u32 %s3, 4
      %s59 = int_to_ptr.hbm [resolvable:$true] %s58
      %s60 = sshll.u32 [#allocation8], 4
      %s61 = int_to_ptr.vmem [resolvable:$true] %s60
      %66 = dma.hbm_to_vmem [thread:$0]  %s59, 128, %s61, [#allocation9], 64, 64, 4
    $region17: #{tpu_custom_call.1} parent=1 // pred_fallthru
      _
    // Predicated region
    $region18: #{tpu_custom_call.1} parent=1 // pred_check
      _
    $region19: #{tpu_custom_call.1} parent=1 // pred_check_branch
      %68 = sbr.rel (0) target = $region21
    $region20: #{tpu_custom_call.1} parent=1 // pred_region
      _
    $region21: #{tpu_custom_call.1} parent=1 // pred_fallthru
      _
    // Predicated region
    $region22: #{tpu_custom_call.1} parent=1 // pred_check
      _
    $region23: #{tpu_custom_call.1} parent=1 // pred_check_branch
      %70 = sbr.rel (0) target = $region25
    $region24: #{tpu_custom_call.1} parent=1 // pred_region
      %72 = vsyncadd [#allocation9], 0
      %s73 = sshll.u32 %s5, 4
      %s74 = int_to_ptr.hbm [resolvable:$true] %s73
      %s75 = sshll.u32 [#allocation10], 4
      %s76 = int_to_ptr.vmem [resolvable:$true] %s75
      %81 = dma.hbm_to_vmem [thread:$0]  %s74, 1024, %s76, [#allocation9], 64, 64, 4
    $region25: #{tpu_custom_call.1} parent=1 // pred_fallthru
      _
    // Predicated region
    $region26: #{tpu_custom_call.1} parent=1 // pred_check
      _
    $region27: #{tpu_custom_call.1} parent=1 // pred_check_branch
      %83 = sbr.rel (0) target = $region29
    $region28: #{tpu_custom_call.1} parent=1 // pred_region
      _
    $region29: #{tpu_custom_call.1} parent=1 // pred_fallthru
      _
    // Predicated region
    $region30: #{tpu_custom_call.1} parent=1 // pred_check
      _
    $region31: #{tpu_custom_call.1} parent=1 // pred_check_branch
      %85 = sbr.rel (0) target = $region33
    $region32: #{tpu_custom_call.1} parent=1 // pred_region
      %87 = vsyncadd [#allocation12], 0
      %s88 = sshll.u32 %s7, 4
      %s89 = int_to_ptr.hbm [resolvable:$true] %s88
      %s90 = sshll.u32 [#allocation11], 4
      %s91 = int_to_ptr.vmem [resolvable:$true] %s90
      %96 = dma.hbm_to_vmem [thread:$0]  %s89, 1024, %s91, [#allocation12], 64, 64, 4
    $region33: #{tpu_custom_call.1} parent=1 // pred_fallthru
      _
    // Predicated region
    $region34: #{tpu_custom_call.1} parent=1 // pred_check
      _
    $region35: #{tpu_custom_call.1} parent=1 // pred_check_branch
      %98 = sbr.rel (0) target = $region37
    $region36: #{tpu_custom_call.1} parent=1 // pred_region
      _
    $region37: #{tpu_custom_call.1} parent=1 // pred_fallthru
      _
    // Predicated region
    $region38: #{tpu_custom_call.1} parent=1 // pred_check
      _
    $region39: #{tpu_custom_call.1} parent=1 // pred_check_branch
      %100 = sbr.rel (0) target = $region41
    $region40: #{tpu_custom_call.1} parent=1 // pred_region
      %102 = dma.done [#allocation3], 16
    $region41: #{tpu_custom_call.1} parent=1 // pred_fallthru
      _
    // Predicated region
    $region42: #{tpu_custom_call.1} parent=1 // pred_check
      _
    $region43: #{tpu_custom_call.1} parent=1 // pred_check_branch
      %104 = sbr.rel (0) target = $region45
    $region44: #{tpu_custom_call.1} parent=1 // pred_region
      %106 = dma.done [#allocation6], 16
    $region45: #{tpu_custom_call.1} parent=1 // pred_fallthru
      _
    // Predicated region
    $region46: #{tpu_custom_call.1} parent=1 // pred_check
      _
    $region47: #{tpu_custom_call.1} parent=1 // pred_check_branch
      %108 = sbr.rel (0) target = $region49
    $region48: #{tpu_custom_call.1} parent=1 // pred_region
      %110 = dma.done [#allocation6], 128
    $region49: #{tpu_custom_call.1} parent=1 // pred_fallthru
      _
    // Predicated region
    $region50: #{tpu_custom_call.1} parent=1 // pred_check
      _
    $region51: #{tpu_custom_call.1} parent=1 // pred_check_branch
      %112 = sbr.rel (0) target = $region53
    $region52: #{tpu_custom_call.1} parent=1 // pred_region
      %114 = dma.done [#allocation9], 128
    $region53: #{tpu_custom_call.1} parent=1 // pred_fallthru
      _
    // Predicated region
    $region54: #{tpu_custom_call.1} parent=1 // pred_check
      _
    $region55: #{tpu_custom_call.1} parent=1 // pred_check_branch
      %116 = sbr.rel (0) target = $region57
    $region56: #{tpu_custom_call.1} parent=1 // pred_region
      %118 = dma.done [#allocation9], 1024
    $region57: #{tpu_custom_call.1} parent=1 // pred_fallthru
      _
    // Predicated region
    $region58: #{tpu_custom_call.1} parent=1 // pred_check
      _
    $region59: #{tpu_custom_call.1} parent=1 // pred_check_branch
      %120 = sbr.rel (0) target = $region61
    $region60: #{tpu_custom_call.1} parent=1 // pred_region
      %122 = dma.done [#allocation12], 1024
    $region61: #{tpu_custom_call.1} parent=1 // pred_fallthru
      _
    %v124 = vld [vmem:[%s4] sm:$0x1]
    %v125 = vld [vmem:[#allocation2] sm:$0x1]
    %v126 = vld [vmem:[#allocation7] sm:$0xf]
    %v127 = vld [vmem:[#allocation7 + $0x4] sm:$0xf]
    %v130 = vunpack.c.l.b16 %v126
    %v131 = vunpack.c.l.b16 %v127
    %v132 = vpack.c.b16 %v131, %v130
    %vm134 = vcmask 130048
    %v136 = vsel %vm134, %v125, 0
    %138 = vmatpush.bf16.msra.mxu0 0
    %139 = vmatpush.bf16.msra.mxu0 0
    %140 = vmatpush.bf16.msra.mxu0 0
    %141 = vmatpush.bf16.msra.mxu0 0
    %142 = vmatpush.bf16.msra.mxu0 0
    %143 = vmatpush.bf16.msra.mxu0 0
    %144 = vmatpush.bf16.msra.mxu0 0
    %145 = vmatpush.bf16.msra.mxu0 %v132
    %146 = vmatmul.bf16.gmra.mxu0 %v136
    %v147 = vpop.f32.mrf.mxu0
    %v148 = vadd.f32 0.0, %v147
    %v149 = vpop.f32.mrf.mxu0
    %150 = vdwg.mxu0
    %v152 = vperm.slane %v124, 0
    %v154 = vadd.f32 %v152, %v148
    %v155 = vld [vmem:[#allocation5] sm:$0x1]
    %v156 = vld [vmem:[#allocation8] sm:$0xf]
    %v157 = vld [vmem:[#allocation8 + $0x4] sm:$0xf]
    %v160 = vunpack.c.l.b16 %v156
    %v161 = vunpack.c.l.b16 %v157
    %v162 = vpack.c.b16 %v161, %v160
    %v165 = vsel %vm134, %v155, 0
    %167 = vmatpush.bf16.msra.mxu0 0
    %168 = vmatpush.bf16.msra.mxu0 0
    %169 = vmatpush.bf16.msra.mxu0 0
    %170 = vmatpush.bf16.msra.mxu0 0
    %171 = vmatpush.bf16.msra.mxu0 0
    %172 = vmatpush.bf16.msra.mxu0 0
    %173 = vmatpush.bf16.msra.mxu0 0
    %174 = vmatpush.bf16.msra.mxu0 %v162
    %175 = vmatmul.bf16.gmra.mxu0 %v165
    %v176 = vpop.f32.mrf.mxu0
    %v177 = vadd.f32 0.0, %v176
    %v178 = vpop.f32.mrf.mxu0
    %179 = vdwg.mxu0
    %v180 = vadd.f32 %v154, %v177
    %v181 = vmax.f32 %v180, 0.0
    %v182 = vpack.c.bf16 %v181, %v181
    %v183 = vld [vmem:[#allocation10] sm:$0xf]
    %v184 = vld [vmem:[#allocation10 + $0x4] sm:$0xf]
    %v185 = vld [vmem:[#allocation10 + $0x8] sm:$0xf]
    %v186 = vld [vmem:[#allocation10 + $0xc] sm:$0xf]
    %v187 = vld [vmem:[#allocation10 + $0x10] sm:$0xf]
    %v188 = vld [vmem:[#allocation10 + $0x14] sm:$0xf]
    %v189 = vld [vmem:[#allocation10 + $0x18] sm:$0xf]
    %v190 = vld [vmem:[#allocation10 + $0x1c] sm:$0xf]
    %v191 = vld [vmem:[#allocation10 + $0x20] sm:$0xf]
    %v192 = vld [vmem:[#allocation10 + $0x24] sm:$0xf]
    %v193 = vld [vmem:[#allocation10 + $0x28] sm:$0xf]
    %v194 = vld [vmem:[#allocation10 + $0x2c] sm:$0xf]
    %v195 = vld [vmem:[#allocation10 + $0x30] sm:$0xf]
    %v196 = vld [vmem:[#allocation10 + $0x34] sm:$0xf]
    %v197 = vld [vmem:[#allocation10 + $0x38] sm:$0xf]
    %v198 = vld [vmem:[#allocation10 + $0x3c] sm:$0xf]
    %v199 = vld [vmem:[%s6] sm:$0x1]
    %v201 = vperm.slane %v199, 0
    %v219 = vunpack.c.l.b16 %v183
    %v220 = vunpack.c.l.b16 %v184
    %v221 = vunpack.c.l.b16 %v185
    %v222 = vunpack.c.l.b16 %v186
    %v223 = vunpack.c.l.b16 %v187
    %v224 = vunpack.c.l.b16 %v188
    %v225 = vunpack.c.l.b16 %v189
    %v226 = vunpack.c.l.b16 %v190
    %v227 = vunpack.c.l.b16 %v191
    %v228 = vunpack.c.l.b16 %v192
    %v229 = vunpack.c.l.b16 %v193
    %v230 = vunpack.c.l.b16 %v194
    %v231 = vunpack.c.l.b16 %v195
    %v232 = vunpack.c.l.b16 %v196
    %v233 = vunpack.c.l.b16 %v197
    %v234 = vunpack.c.l.b16 %v198
    %v235 = vpack.c.b16 %v220, %v219
    %v236 = vpack.c.b16 %v222, %v221
    %v237 = vpack.c.b16 %v224, %v223
    %v238 = vpack.c.b16 %v226, %v225
    %v239 = vpack.c.b16 %v228, %v227
    %v240 = vpack.c.b16 %v230, %v229
    %v241 = vpack.c.b16 %v232, %v231
    %v242 = vpack.c.b16 %v234, %v233
    %251 = vmatpush.bf16.msra.mxu0 %v242
    %252 = vmatpush.bf16.msra.mxu0 %v241
    %253 = vmatpush.bf16.msra.mxu0 %v240
    %254 = vmatpush.bf16.msra.mxu0 %v239
    %255 = vmatpush.bf16.msra.mxu0 %v238
    %256 = vmatpush.bf16.msra.mxu0 %v237
    %257 = vmatpush.bf16.msra.mxu0 %v236
    %258 = vmatpush.bf16.msra.mxu0 %v235
    %259 = vmatmul.bf16.gmra.mxu0 %v182
    %v260 = vpop.f32.mrf.mxu0
    %v261 = vadd.f32 %v201, %v260
    %v262 = vpop.f32.mrf.mxu0
    %263 = vdwg.mxu0
    %v264 = vmax.f32 %v261, 0.0
    %v265 = vpack.c.bf16 %v264, %v264
    %v266 = vld [vmem:[#allocation11] sm:$0xf]
    %v267 = vld [vmem:[#allocation11 + $0x4] sm:$0xf]
    %v268 = vld [vmem:[#allocation11 + $0x8] sm:$0xf]
    %v269 = vld [vmem:[#allocation11 + $0xc] sm:$0xf]
    %v270 = vld [vmem:[#allocation11 + $0x10] sm:$0xf]
    %v271 = vld [vmem:[#allocation11 + $0x14] sm:$0xf]
    %v272 = vld [vmem:[#allocation11 + $0x18] sm:$0xf]
    %v273 = vld [vmem:[#allocation11 + $0x1c] sm:$0xf]
    %v274 = vld [vmem:[#allocation11 + $0x20] sm:$0xf]
    %v275 = vld [vmem:[#allocation11 + $0x24] sm:$0xf]
    %v276 = vld [vmem:[#allocation11 + $0x28] sm:$0xf]
    %v277 = vld [vmem:[#allocation11 + $0x2c] sm:$0xf]
    %v278 = vld [vmem:[#allocation11 + $0x30] sm:$0xf]
    %v279 = vld [vmem:[#allocation11 + $0x34] sm:$0xf]
    %v280 = vld [vmem:[#allocation11 + $0x38] sm:$0xf]
    %v281 = vld [vmem:[#allocation11 + $0x3c] sm:$0xf]
    %v282 = vld [vmem:[%s8] sm:$0x1]
    %v284 = vperm.slane %v282, 0
    %v302 = vunpack.c.l.b16 %v266
    %v303 = vunpack.c.l.b16 %v267
    %v304 = vunpack.c.l.b16 %v268
    %v305 = vunpack.c.l.b16 %v269
    %v306 = vunpack.c.l.b16 %v270
    %v307 = vunpack.c.l.b16 %v271
    %v308 = vunpack.c.l.b16 %v272
    %v309 = vunpack.c.l.b16 %v273
    %v310 = vunpack.c.l.b16 %v274
    %v311 = vunpack.c.l.b16 %v275
    %v312 = vunpack.c.l.b16 %v276
    %v313 = vunpack.c.l.b16 %v277
    %v314 = vunpack.c.l.b16 %v278
    %v315 = vunpack.c.l.b16 %v279
    %v316 = vunpack.c.l.b16 %v280
    %v317 = vunpack.c.l.b16 %v281
    %v318 = vpack.c.b16 %v303, %v302
    %v319 = vpack.c.b16 %v305, %v304
    %v320 = vpack.c.b16 %v307, %v306
    %v321 = vpack.c.b16 %v309, %v308
    %v322 = vpack.c.b16 %v311, %v310
    %v323 = vpack.c.b16 %v313, %v312
    %v324 = vpack.c.b16 %v315, %v314
    %v325 = vpack.c.b16 %v317, %v316
    %334 = vmatpush.bf16.msra.mxu0 %v325
    %335 = vmatpush.bf16.msra.mxu0 %v324
    %336 = vmatpush.bf16.msra.mxu0 %v323
    %337 = vmatpush.bf16.msra.mxu0 %v322
    %338 = vmatpush.bf16.msra.mxu0 %v321
    %339 = vmatpush.bf16.msra.mxu0 %v320
    %340 = vmatpush.bf16.msra.mxu0 %v319
    %341 = vmatpush.bf16.msra.mxu0 %v318
    %342 = vmatmul.bf16.gmra.mxu0 %v265
    %v343 = vpop.f32.mrf.mxu0
    %v344 = vadd.f32 %v284, %v343
    %v345 = vpop.f32.mrf.mxu0
    %346 = vdwg.mxu0
    %v347 = vlaneseq
    %v348 = vand.u32 %v347, 127
    %vm349 = vcmp.lt.s32.totalorder %v348, 16
    %v350 = vsel %vm349, %v344, -1e+30
    %vm351 = vcmask 1041408
    %v352 = vsel %vm351, %v350, -inf
    %353 = vmax.xlane.f32.xlu0 %v352
    %v354 = vpop.xlane.xlu0 %353
    %v355 = vsub.f32 %v350, %v354
    %v356 = vmul.f32 %v355, 1.442695
    %v357 = vpow.pop %v356
    %v358 = vsel %vm351, %v357, 0.0
    %359 = vadd.xlane.f32.xlu0 %v358
    %v360 = vpop.xlane.xlu0 %359
    %v361 = vrcp.pop %v360
    %v362 = vmul.f32 %v360, %v361
    %v363 = vsub.f32 1.0, %v362
    %v364 = vmul.f32 %v361, %v363
    %v365 = vadd.f32 %v361, %v364
    %vm366 = vweird.f32 %v360
    %vm367 = vweird.f32 %v361
    %vm368 = vmor %vm366, %vm367
    %v369 = vsel %vm368, %v361, %v365
    %v370 = vand.u32 2147483647, %v360
    %vm371 = vcmp.eq.f32.partialorder %v370, 8.507059e+37
    %v372 = vand.u32 %v360, 2147483648
    %v373 = vor.u32 1.1754944e-38, %v372
    %v374 = vsel %vm371, %v373, %v369
    %v375 = vmul.f32 %v357, %v374
    %vm376 = vcmask 123904
    %377 = vst.msk [vmem:[#allocation13] sm:$0x3] %vm376, %v375
    // Predicated region
    $region62: #{tpu_custom_call.1} parent=1 // pred_check
      _
    $region63: #{tpu_custom_call.1} parent=1 // pred_check_branch
      %379 = sbr.rel (0) target = $region65
    $region64: #{tpu_custom_call.1} parent=1 // pred_region
      %381 = vsyncadd [#allocation4], 0
      %s383 = sshll.u32 [#allocation13], 4
      %s384 = int_to_ptr.vmem [resolvable:$true] %s383
      %s385 = sshll.u32 %s9, 4
      %s386 = int_to_ptr.hbm [resolvable:$true] %s385
      %388 = dma.vmem_to_hbm [thread:$0]  %s384, 32, %s386, [#allocation4]
    $region65: #{tpu_custom_call.1} parent=1 // pred_fallthru
      _
    // Predicated region
    $region66: #{tpu_custom_call.1} parent=1 // pred_check
      _
    $region67: #{tpu_custom_call.1} parent=1 // pred_check_branch
      %390 = sbr.rel (0) target = $region69
    $region68: #{tpu_custom_call.1} parent=1 // pred_region
      %392 = dma.done [#allocation4], 32
    $region69: #{tpu_custom_call.1} parent=1 // pred_fallthru
      _
    %393 = vsyncpa [#allocation3], 1
    %394 = vsyncpa [#allocation6], 1
    %395 = vsyncpa [#allocation9], 1
    %396 = vsyncpa [#allocation12], 1
    %397 = vsyncpa [#allocation4], 1

</llo_original>
